<compile_context>
chip_gen: v7x
topology: tpu7x:2x2x1
jax: 0.10.0
libtpu: 0.0.40
codegen_flags: <defaults>
</compile_context>

<pallas_src>
import math

import jax
import jax.numpy as jnp
from jax.experimental import pallas as pl
from jax.experimental.pallas import tpu as pltpu


# ---------------------------------------------------------------------------
# Hardware / budget helpers (generation-aware, with safe fallbacks).
# ---------------------------------------------------------------------------
def _device_kind():
    try:
        return jax.devices()[0].device_kind.lower()
    except Exception:
        return ""


def _vmem_capacity_bytes():
    try:
        info = pltpu.get_tpu_info()
        cap = getattr(info, "vmem_capacity_bytes", None)
        if cap:
            return int(cap)
    except Exception:
        pass
    kind = _device_kind()
    if "v7" in kind:
        return 64 << 20
    return 128 << 20


def _is_v5e():
    kind = _device_kind()
    return ("v5e" in kind) or ("v5 lite" in kind) or ("v5litepod" in kind)


def _round_down(x, m):
    return (x // m) * m


def _sublane_multiple(itemsize):
    # 8 for f32, 16 for bf16, 32 for int8 -> full vreg fill on the sublane axis.
    return max(8, 32 // itemsize)


def _pick_tiles(R, S, itemsize, per_block_budget):
    """Pick (rows_tile, s_tile) for the (B*C, S) layout from a VMEM budget."""
    sub = _sublane_multiple(itemsize)
    rows_tile = R if R <= sub else sub
    if S <= 128:
        s_tile = S                       # full-extent lane block (exempt from 128 rule)
    else:
        cap = max(128, _round_down(per_block_budget // (rows_tile * itemsize), 128))
        s_tile = S if S <= cap else cap  # if < S it is a multiple of 128
    # Whole spatial extent fits one tile: spend leftover budget on more rows so
    # each grid step moves more bytes (amortizes the ~0.35us per-step overhead).
    if s_tile == S and rows_tile < R:
        max_rows = int(per_block_budget // max(1, S * itemsize))
        if max_rows >= R:
            rows_tile = R
        else:
            rows_tile = max(rows_tile, _round_down(max_rows, sub))
    return rows_tile, s_tile


def _maybe_buffered_spec(block_shape, index_map, extra_buffering):
    """x BlockSpec, optionally triple-buffered (v5e only)."""
    if extra_buffering:
        try:
            return pl.BlockSpec(block_shape, index_map, pipeline_mode=pl.Buffered(3))
        except Exception:
            pass  # older/newer signatures: fall back to default double buffering
    return pl.BlockSpec(block_shape, index_map)


# ---------------------------------------------------------------------------
# Fused single-pass kernel: reduce + FC1/ReLU/FC2/sigmoid + scale, per batch.
# ---------------------------------------------------------------------------
def _make_fused_kernel(inv_s):
    def kernel(x_ref, w1_ref, b1_ref, w2t_ref, b2_ref, o_ref):
        # x_ref/o_ref: (1, C, S); w1_ref: (C, hid); b1_ref: (1, hid);
        # w2t_ref: (C, hid) (PyTorch-native fc2 layout); b2_ref: (C, 1).
        mean_col = jnp.sum(x_ref[0], axis=1, keepdims=True,
                           dtype=jnp.float32) * inv_s                  # (C, 1)
        # FC1 + ReLU: h[j] = relu(sum_c w1[c, j] * mean[c] + b1[j])
        w1 = w1_ref[...].astype(jnp.float32)                           # (C, hid)
        h = jnp.sum(w1 * mean_col, axis=0, keepdims=True) \
            + b1_ref[...].astype(jnp.float32)                          # (1, hid)
        h = jnp.maximum(h, 0.0)
        # FC2: logits[c] = sum_j w2t[c, j] * h[j] + b2[c]
        w2t = w2t_ref[...].astype(jnp.float32)                         # (C, hid)
        logits = jnp.sum(w2t * h, axis=1, keepdims=True) \
            + b2_ref[...].astype(jnp.float32)                          # (C, 1)
        gate = jax.nn.sigmoid(logits).astype(o_ref.dtype)              # (C, 1)
        o_ref[0] = x_ref[0] * gate

    return kernel


# ---------------------------------------------------------------------------
# Two-pass path, pass 1: tiled per-row (= per batch*channel) sum over lanes.
# ---------------------------------------------------------------------------
def _make_reduce_kernel(S, s_tile, needs_mask):
    def kernel(x_ref, sum_ref):
        # x_ref: (rows_tile, s_tile) streamed; sum_ref: (rows_tile, 1) f32 resident.
        s = pl.program_id(1)

        @pl.when(s == 0)
        def _():
            sum_ref[...] = jnp.zeros_like(sum_ref)

        if needs_mask:
            last = pl.num_programs(1) - 1

            @pl.when(s != last)
            def _():
                sum_ref[...] += jnp.sum(x_ref[...], axis=1, keepdims=True,
                                        dtype=jnp.float32)

            @pl.when(s == last)
            def _():
                tile = x_ref[...]
                lane = jax.lax.broadcasted_iota(jnp.int32, tile.shape, 1)
                valid = (s * s_tile + lane) < S
                tile = jnp.where(valid, tile, jnp.zeros_like(tile))
                sum_ref[...] += jnp.sum(tile, axis=1, keepdims=True,
                                        dtype=jnp.float32)
        else:
            sum_ref[...] += jnp.sum(x_ref[...], axis=1, keepdims=True,
                                    dtype=jnp.float32)

    return kernel


# ---------------------------------------------------------------------------
# Two-pass path, pass 2: scale every tile by the per-row gate (lane broadcast).
# ---------------------------------------------------------------------------
def _scale_kernel(gate_ref, x_ref, o_ref):
    # gate_ref: (rows_tile, 1); x_ref/o_ref: (rows_tile, s_tile).
    o_ref[...] = x_ref[...] * gate_ref[...]


# ---------------------------------------------------------------------------
# Wrapper.  NCDHW in/out.
#   w1: (C, hid)  = fc1.weight.reshape(hid, C).T      b1: (hid,)
#   w2: (hid, C)  = fc2.weight.reshape(C, hid).T      b2: (C,)
# ---------------------------------------------------------------------------
def squeeze_excite_3d(x_ncdhw, w1, b1, w2, b2, *, fused=None,
                      per_block_budget_bytes=None):
    B, C, D, H, W = x_ncdhw.shape
    S = D * H * W
    R = B * C
    dtype = x_ncdhw.dtype
    itemsize = jnp.dtype(dtype).itemsize
    hid = w1.shape[1]

    cap = _vmem_capacity_bytes()
    small_vmem = cap <= (64 << 20)                      # v7x
    limit_cap = (40 << 20) if small_vmem else (96 << 20)
    budget = per_block_budget_bytes if per_block_budget_bytes is not None \
        else ((4 << 20) if small_vmem else (8 << 20))
    extra_buf = _is_v5e()

    slab_bytes = C * S * itemsize                       # one batch's (C, S) slab
    if fused is None:
        # 2 in + 2 out buffers + headroom for an f32 reduce temp on sub-f32 inputs.
        fused = (6 * max(slab_bytes, C * S * 4) + (2 << 20)) <= limit_cap

    inv_s = float(1.0 / S)

    # ---------------- Fused single-pass path ------------------------------
    if fused:
        x_bcs = x_ncdhw.reshape(B, C, S)                # free: NCDHW is contiguous
        vmem_limit = int(min(limit_cap,
                             max(32 << 20, 6 * max(slab_bytes, C * S * 4) + (4 << 20))))
        out = pl.pallas_call(
            _make_fused_kernel(inv_s),
            out_shape=jax.ShapeDtypeStruct((B, C, S), dtype),
            grid_spec=pltpu.PrefetchScalarGridSpec(
                num_scalar_prefetch=0,
                grid=(B,),
                in_specs=[
                    pl.BlockSpec((1, C, S), lambda b: (b, 0, 0)),   # x slab
                    pl.BlockSpec((C, hid), lambda b: (0, 0)),       # w1
                    pl.BlockSpec((1, hid), lambda b: (0, 0)),       # b1 row
                    pl.BlockSpec((C, hid), lambda b: (0, 0)),       # w2^T
                    pl.BlockSpec((C, 1), lambda b: (0, 0)),         # b2 col
                ],
                out_specs=pl.BlockSpec((1, C, S), lambda b: (b, 0, 0)),
            ),
            compiler_params=pltpu.CompilerParams(
                dimension_semantics=("parallel",),
                vmem_limit_bytes=vmem_limit,
            ),
        )(x_bcs, w1, b1.reshape(1, hid), w2.T, b2.reshape(C, 1))
        return out.reshape(B, C, D, H, W)

    # ---------------- Two-pass path ----------------------------------------
    x_rs = x_ncdhw.reshape(R, S)                        # free: contiguous view
    rows_tile, s_tile = _pick_tiles(R, S, itemsize, budget)
    n_rows = math.ceil(R / rows_tile)
    n_s = math.ceil(S / s_tile)
    needs_mask = (S % s_tile) != 0
    block_bytes = rows_tile * s_tile * itemsize
    n_x_buf = 3 if extra_buf else 2
    vmem_limit = int(min(limit_cap,
                         max(32 << 20, (n_x_buf + 2) * block_bytes + (4 << 20))))

    x_spec = _maybe_buffered_spec((rows_tile, s_tile), lambda r, s: (r, s), extra_buf)

    # ---- Pass 1: per-(batch*channel) sums (rows axis parallel for megacore) ----
    sums = pl.pallas_call(
        _make_reduce_kernel(S, s_tile, needs_mask),
        out_shape=jax.ShapeDtypeStruct((R, 1), jnp.float32),
        grid_spec=pltpu.PrefetchScalarGridSpec(
            num_scalar_prefetch=0,
            grid=(n_rows, n_s),
            in_specs=[x_spec],
            out_specs=pl.BlockSpec((rows_tile, 1), lambda r, s: (r, 0)),
        ),
        compiler_params=pltpu.CompilerParams(
            dimension_semantics=("parallel", "arbitrary"),
            vmem_limit_bytes=vmem_limit,
        ),
    )(x_rs)

    # ---- FC1 / ReLU / FC2 / sigmoid: microscopic, once in plain JAX ----
    mean = (sums[:, 0] * jnp.float32(inv_s)).reshape(B, C)            # (B, C)
    h = jnp.maximum(mean @ w1.astype(jnp.float32)
                    + b1.astype(jnp.float32), 0.0)                    # (B, hid)
    logits = h @ w2.astype(jnp.float32) + b2.astype(jnp.float32)      # (B, C)
    gate = jax.nn.sigmoid(logits).astype(dtype).reshape(R, 1)         # (R, 1)

    # ---- Pass 2: stream tiles, scale by the per-row gate ----
    out = pl.pallas_call(
        _scale_kernel,
        out_shape=jax.ShapeDtypeStruct((R, S), dtype),
        grid_spec=pltpu.PrefetchScalarGridSpec(
            num_scalar_prefetch=0,
            grid=(n_rows, n_s),
            in_specs=[
                pl.BlockSpec((rows_tile, 1), lambda r, s: (r, 0)),    # gate
                x_spec,                                               # x
            ],
            out_specs=pl.BlockSpec((rows_tile, s_tile), lambda r, s: (r, s)),
        ),
        compiler_params=pltpu.CompilerParams(
            dimension_semantics=("parallel", "parallel"),
            vmem_limit_bytes=vmem_limit,
        ),
    )(gate, x_rs)

    return out.reshape(B, C, D, H, W)


def squeeze_excite_3d_ref(x, w1, b1, w2, b2):
    """Pure-JAX reference mirroring the PyTorch forward (NCDHW)."""
    mean = jnp.mean(x.astype(jnp.float32), axis=(2, 3, 4))            # (B, C)
    h = jnp.maximum(mean @ w1.astype(jnp.float32)
                    + b1.astype(jnp.float32), 0.0)                    # (B, hid)
    logits = h @ w2.astype(jnp.float32) + b2.astype(jnp.float32)      # (B, C)
    gate = jax.nn.sigmoid(logits).astype(x.dtype)[:, :, None, None, None]
    return x * gate


if __name__ == "__main__":
    key = jax.random.PRNGKey(0)

    def run_case(B, C, D, H, W, dtype=jnp.float32, rd_ratio=0.25,
                 atol=1e-4, rtol=1e-4, **kwargs):
        hid = max(int(C * rd_ratio), 1)
        seed = C * 1000003 + D * H * W
        k_x, k_w1, k_b1, k_w2, k_b2 = jax.random.split(
            jax.random.fold_in(key, seed), 5)
        x = jax.random.normal(k_x, (B, C, D, H, W), dtype=jnp.float32).astype(dtype)
        # PyTorch Conv3d weight is (out, in, 1, 1, 1); we store the matmul-equivalent
        # transpose: w1 = fc1.weight.reshape(hid, C).T, w2 = fc2.weight.reshape(C, hid).T
        w1 = jax.random.normal(k_w1, (C, hid), dtype=jnp.float32) * 0.1
        b1 = jax.random.normal(k_b1, (hid,), dtype=jnp.float32) * 0.1
        w2 = jax.random.normal(k_w2, (hid, C), dtype=jnp.float32) * 0.1
        b2 = jax.random.normal(k_b2, (C,), dtype=jnp.float32) * 0.1

        out = jax.block_until_ready(
            squeeze_excite_3d(x, w1, b1, w2, b2, **kwargs))
        ref = squeeze_excite_3d_ref(x, w1, b1, w2, b2)
        assert out.shape == (B, C, D, H, W)
        assert jnp.allclose(out.astype(jnp.float32), ref.astype(jnp.float32),
                            atol=atol, rtol=rtol), "mismatch vs reference"

    # 1) Tiny f32 case: auto-dispatch takes the fused single-pass path.
    run_case(2, 8, 4, 4, 4)
    # 2) f32, forced two-pass with a tiny tile budget: multiple spatial tiles with a
    #    masked partial tail (S=315, s_tile=256) and a partial row block (R=20).
    run_case(2, 10, 5, 7, 9, fused=False, per_block_budget_bytes=8 * 1024)
    # 3) f32, forced two-pass with the auto (budget-driven) tile sizing.
    run_case(2, 16, 12, 12, 20, fused=False)
    # 4) bf16: fused auto path, then forced two-pass with rows_tile = 16 sublanes.
    run_case(2, 16, 8, 8, 8, dtype=jnp.bfloat16, atol=2e-2, rtol=2e-2)
    run_case(2, 16, 8, 8, 8, dtype=jnp.bfloat16, atol=2e-2, rtol=2e-2,
             fused=False, per_block_budget_bytes=16 * 1024)

    print("KERNEL_OK")
</pallas_src>

<mosaic_0001>
module attributes {stable_mosaic.version = 11 : i64} {
  func.func @kernel(%arg0: i32, %arg1: memref<1x8x64xf32, #tpu.memory_space<vmem>>, %arg2: memref<8x2xf32, #tpu.memory_space<vmem>>, %arg3: memref<1x2xf32, #tpu.memory_space<vmem>>, %arg4: memref<8x2xf32, #tpu.memory_space<vmem>>, %arg5: memref<8x1xf32, #tpu.memory_space<vmem>>, %arg6: memref<1x8x64xf32, #tpu.memory_space<vmem>>) attributes {dimension_semantics = [#tpu.dimension_semantics<parallel>], iteration_bounds = array<i64: 2>, scalar_prefetch = 0 : i64, scratch_operands = 0 : i64, tpu.core_type = #tpu.core_type<tc>, window_params = [{transform_indices = @transform_0, window_bounds = array<i64: 1, 8, 64>}, {pipeline_mode = #tpu.pipeline_mode<synchronous>, transform_indices = @transform_1, window_bounds = array<i64: 8, 2>}, {pipeline_mode = #tpu.pipeline_mode<synchronous>, transform_indices = @transform_2, window_bounds = array<i64: 1, 2>}, {pipeline_mode = #tpu.pipeline_mode<synchronous>, transform_indices = @transform_3, window_bounds = array<i64: 8, 2>}, {pipeline_mode = #tpu.pipeline_mode<synchronous>, transform_indices = @transform_4, window_bounds = array<i64: 8, 1>}, {transform_indices = @transform_5, window_bounds = array<i64: 1, 8, 64>}]} {
    %c0 = arith.constant 0 : index
    %c0_0 = arith.constant 0 : index
    %c0_1 = arith.constant 0 : index
    %0 = vector.load %arg1[%c0, %c0_0, %c0_1] : memref<1x8x64xf32, #tpu.memory_space<vmem>>, vector<1x8x64xf32>
    %1 = vector.shape_cast %0 : vector<1x8x64xf32> to vector<8x64xf32>
    %cst = arith.constant dense<0.000000e+00> : vector<8xf32>
    %2 = vector.multi_reduction <add>, %1, %cst [1] : vector<8x64xf32> to vector<8xf32>
    %3 = vector.shape_cast %2 : vector<8xf32> to vector<8x1xf32>
    %cst_2 = arith.constant 1.562500e-02 : f32
    %4 = vector.broadcast %cst_2 : f32 to vector<8x1xf32>
    %5 = arith.mulf %3, %4 : vector<8x1xf32>
    %c0_3 = arith.constant 0 : index
    %c0_4 = arith.constant 0 : index
    %6 = vector.load %arg2[%c0_3, %c0_4] : memref<8x2xf32, #tpu.memory_space<vmem>>, vector<8x2xf32>
    %7 = vector.broadcast %5 : vector<8x1xf32> to vector<8x2xf32>
    %8 = arith.mulf %6, %7 : vector<8x2xf32>
    %cst_5 = arith.constant dense<0.000000e+00> : vector<2xf32>
    %9 = vector.multi_reduction <add>, %8, %cst_5 [0] : vector<8x2xf32> to vector<2xf32>
    %10 = vector.shape_cast %9 : vector<2xf32> to vector<1x2xf32>
    %c0_6 = arith.constant 0 : index
    %c0_7 = arith.constant 0 : index
    %11 = vector.load %arg3[%c0_6, %c0_7] : memref<1x2xf32, #tpu.memory_space<vmem>>, vector<1x2xf32>
    %12 = arith.addf %10, %11 : vector<1x2xf32>
    %cst_8 = arith.constant 0.000000e+00 : f32
    %13 = vector.broadcast %cst_8 : f32 to vector<1x2xf32>
    %14 = arith.maximumf %12, %13 : vector<1x2xf32>
    %c0_9 = arith.constant 0 : index
    %c0_10 = arith.constant 0 : index
    %15 = vector.load %arg4[%c0_9, %c0_10] : memref<8x2xf32, #tpu.memory_space<vmem>>, vector<8x2xf32>
    %16 = vector.broadcast %14 : vector<1x2xf32> to vector<8x2xf32>
    %17 = arith.mulf %15, %16 : vector<8x2xf32>
    %cst_11 = arith.constant dense<0.000000e+00> : vector<8xf32>
    %18 = vector.multi_reduction <add>, %17, %cst_11 [1] : vector<8x2xf32> to vector<8xf32>
    %19 = vector.shape_cast %18 : vector<8xf32> to vector<8x1xf32>
    %c0_12 = arith.constant 0 : index
    %c0_13 = arith.constant 0 : index
    %20 = vector.load %arg5[%c0_12, %c0_13] : memref<8x1xf32, #tpu.memory_space<vmem>>, vector<8x1xf32>
    %21 = arith.addf %19, %20 : vector<8x1xf32>
    %22 = arith.negf %21 : vector<8x1xf32>
    %23 = math.exp %22 : vector<8x1xf32>
    %cst_14 = arith.constant 1.000000e+00 : f32
    %24 = vector.broadcast %cst_14 : f32 to vector<8x1xf32>
    %25 = arith.addf %24, %23 : vector<8x1xf32>
    %26 = arith.divf %24, %25 : vector<8x1xf32>
    %c0_15 = arith.constant 0 : index
    %c0_16 = arith.constant 0 : index
    %c0_17 = arith.constant 0 : index
    %27 = vector.load %arg1[%c0_15, %c0_16, %c0_17] : memref<1x8x64xf32, #tpu.memory_space<vmem>>, vector<1x8x64xf32>
    %28 = vector.shape_cast %27 : vector<1x8x64xf32> to vector<8x64xf32>
    %29 = vector.broadcast %26 : vector<8x1xf32> to vector<8x64xf32>
    %30 = arith.mulf %28, %29 : vector<8x64xf32>
    %c0_18 = arith.constant 0 : index
    %c0_19 = arith.constant 0 : index
    %c0_20 = arith.constant 0 : index
    %31 = vector.load %arg6[%c0_18, %c0_19, %c0_20] : memref<1x8x64xf32, #tpu.memory_space<vmem>>, vector<1x8x64xf32>
    %32 = vector.shape_cast %31 : vector<1x8x64xf32> to vector<8x64xf32>
    %33 = vector.shape_cast %30 : vector<8x64xf32> to vector<1x8x64xf32>
    tpu.vector_store %arg6[%c0_18, %c0_19, %c0_20], %33 {strides = array<i32>} : memref<1x8x64xf32, #tpu.memory_space<vmem>>, vector<1x8x64xf32>,
    return
  }
  func.func @transform_0(%arg0: i32) -> (i32, i32, i32) {
    %c0_i32 = arith.constant 0 : i32
    %c0_i32_0 = arith.constant 0 : i32
    %c0_i32_1 = arith.constant 0 : i32
    return %arg0, %c0_i32, %c0_i32_0 : i32, i32, i32
  }
  func.func @transform_1(%arg0: i32) -> (i32, i32) {
    %c0_i32 = arith.constant 0 : i32
    %c0_i32_0 = arith.constant 0 : i32
    %c0_i32_1 = arith.constant 0 : i32
    return %c0_i32, %c0_i32_0 : i32, i32
  }
  func.func @transform_2(%arg0: i32) -> (i32, i32) {
    %c0_i32 = arith.constant 0 : i32
    %c0_i32_0 = arith.constant 0 : i32
    %c0_i32_1 = arith.constant 0 : i32
    return %c0_i32, %c0_i32_0 : i32, i32
  }
  func.func @transform_3(%arg0: i32) -> (i32, i32) {
    %c0_i32 = arith.constant 0 : i32
    %c0_i32_0 = arith.constant 0 : i32
    %c0_i32_1 = arith.constant 0 : i32
    return %c0_i32, %c0_i32_0 : i32, i32
  }
  func.func @transform_4(%arg0: i32) -> (i32, i32) {
    %c0_i32 = arith.constant 0 : i32
    %c0_i32_0 = arith.constant 0 : i32
    %c0_i32_1 = arith.constant 0 : i32
    return %c0_i32, %c0_i32_0 : i32, i32
  }
  func.func @transform_5(%arg0: i32) -> (i32, i32, i32) {
    %c0_i32 = arith.constant 0 : i32
    %c0_i32_0 = arith.constant 0 : i32
    %c0_i32_1 = arith.constant 0 : i32
    return %arg0, %c0_i32, %c0_i32_0 : i32, i32, i32
  }
}

</mosaic_0001>

<llo_original>
// kernel: tpu_custom_call.1
$region0: #{tpu_custom_call.1}
  #allocation0 [shape = 'u32[]', space=smem, size = 0x4, offset = 0x4, fixed_abs, tag = 'smem constant byte address 0x4 - core index']
  #allocation1 [shape = 'u32[144,128]{1,0:T(1,128)}', space=vmem, size = 0x12000, scoped, tag = 'internal scratch']
  %s0 = inlined_call_operand.vmem [shape: f32[2,8,64], index: 0, kind: input, shape index: {}]
  %s1 = inlined_call_operand.vmem [shape: f32[8,2], index: 1, kind: input, shape index: {}]
  %s2 = inlined_call_operand.vmem [shape: f32[1,2], index: 2, kind: input, shape index: {}]
  %s3 = inlined_call_operand.vmem [shape: f32[8,2], index: 3, kind: input, shape index: {}]
  %s4 = inlined_call_operand.vmem [shape: f32[8,1], index: 4, kind: input, shape index: {}]
  %s5 = inlined_call_operand.hbm [shape: f32[2,8,64], index: 5, kind: output, shape index: {}]
  %s6 = sld [smem:[#allocation0]]
  $region53: #{tpu_custom_call.1} parent=0
    _
  %s8 = ssub.s32 1, %s6
  %s9 = scalar_select 0, %s8, %s6
  $region1: #{tpu_custom_call.1} parent=0
    #allocation2 [shape = 'u8[8192]{0}', space=vmem, size = 0x2000, scoped, tag = 'output window, operand 0']
    #allocation3 [shape = 's32[2]{0}', space=sflag, size = 0x8, scoped, tag = 'scoped memory for tpu_custom_call.1']
    %10 = vsyncpa [#allocation3], 0
    %s11 = scalar_lea.sflag [#allocation3], 1
    %12 = vsyncpa %s11, 0
    loop: start=0, step=1, limit=4
    $region2: #{tpu_custom_call.1} parent=1 // loop_pre_header
      _
    $region3: #{tpu_custom_call.1} parent=1 // loop_header
      %s14 = sphi 0, %s18
      %p15 = scmp.ge.s32.totalorder %s14, 4
      %s24 = sphi 0, %s26
      %s27 = sphi 0, %s24
      %s28 = sphi 0, %s27
      %s44 = sphi 0, %s28
      %s48 = sphi 0, %s48
      %s50 = sphi 0, %s48
      %s51 = sphi 0, %s50
      %s65 = sphi 0, %s51
      %s69 = sphi 0, %s69
      %s71 = sphi 0, %s69
      %s72 = sphi 0, %s71
      %s86 = sphi 0, %s72
      %s90 = sphi 0, %s90
      %s92 = sphi 0, %s90
      %s93 = sphi 0, %s92
      %s107 = sphi 0, %s93
      %s111 = sphi 0, %s111
      %s113 = sphi 0, %s111
      %s114 = sphi 0, %s113
      %s128 = sphi 0, %s114
      %s134 = sphi 0, %s136
      %s137 = sphi 0, %s134
      %s138 = sphi 0, %s137
      %s154 = sphi 0, %s138
    $region4: #{tpu_custom_call.1} parent=1 // loop_header_branch
      %17 = sbr.rel (%p15) target = $region8
    $region5: #{tpu_custom_call.1} parent=1 // loop_body
      %s19 = ssub.s32 %s14, 1
      %s20 = ssub.s32 %s14, 2
      %s21 = sadd.s32 %s14, 1
      %s22 = ssub.s32 %s14, %s21
      %p23 = scmp.eq.s32.totalorder %s22, 0
      %s25 = sadd.s32 %s24, 1
      %s26 = scalar_select %p23, %s24, %s25
      %p29 = pneg %p23
      %p30 = scmp.eq.s32.totalorder %s14, 1
      %p31 = por %p29, %p30
      %p32 = scmp.ne.s32.totalorder %s24, %s27
      %p33 = scmp.eq.s32.totalorder %s14, 0
      %p34 = por %p32, %p33
      %p35 = scmp.ne.s32.totalorder %s24, %s27
      %p36 = scmp.eq.s32.totalorder %s19, 1
      %p37 = por %p35, %p36
      %p38 = scmp.ne.s32.totalorder %s27, %s28
      %p39 = scmp.eq.s32.totalorder %s19, 0
      %p40 = por %p38, %p39
      %p41 = scmp.ne.s32.totalorder %s27, %s28
      %p42 = scmp.eq.s32.totalorder %s20, 1
      %p43 = por %p41, %p42
      %p45 = scmp.ne.s32.totalorder %s28, %s44
      %p46 = scmp.eq.s32.totalorder %s20, 0
      %p47 = por %p45, %p46
      %s49 = sadd.s32 %s48, 1
      %p52 = scmp.eq.s32.totalorder %s14, 1
      %p53 = scmp.ne.s32.totalorder %s48, %s50
      %p54 = scmp.eq.s32.totalorder %s14, 0
      %p55 = por %p53, %p54
      %p56 = scmp.ne.s32.totalorder %s48, %s50
      %p57 = scmp.eq.s32.totalorder %s19, 1
      %p58 = por %p56, %p57
      %p59 = scmp.ne.s32.totalorder %s50, %s51
      %p60 = scmp.eq.s32.totalorder %s19, 0
      %p61 = por %p59, %p60
      %p62 = scmp.ne.s32.totalorder %s50, %s51
      %p63 = scmp.eq.s32.totalorder %s20, 1
      %p64 = por %p62, %p63
      %p66 = scmp.ne.s32.totalorder %s51, %s65
      %p67 = scmp.eq.s32.totalorder %s20, 0
      %p68 = por %p66, %p67
      %s70 = sadd.s32 %s69, 1
      %p73 = scmp.eq.s32.totalorder %s14, 1
      %p74 = scmp.ne.s32.totalorder %s69, %s71
      %p75 = scmp.eq.s32.totalorder %s14, 0
      %p76 = por %p74, %p75
      %p77 = scmp.ne.s32.totalorder %s69, %s71
      %p78 = scmp.eq.s32.totalorder %s19, 1
      %p79 = por %p77, %p78
      %p80 = scmp.ne.s32.totalorder %s71, %s72
      %p81 = scmp.eq.s32.totalorder %s19, 0
      %p82 = por %p80, %p81
      %p83 = scmp.ne.s32.totalorder %s71, %s72
      %p84 = scmp.eq.s32.totalorder %s20, 1
      %p85 = por %p83, %p84
      %p87 = scmp.ne.s32.totalorder %s72, %s86
      %p88 = scmp.eq.s32.totalorder %s20, 0
      %p89 = por %p87, %p88
      %s91 = sadd.s32 %s90, 1
      %p94 = scmp.eq.s32.totalorder %s14, 1
      %p95 = scmp.ne.s32.totalorder %s90, %s92
      %p96 = scmp.eq.s32.totalorder %s14, 0
      %p97 = por %p95, %p96
      %p98 = scmp.ne.s32.totalorder %s90, %s92
      %p99 = scmp.eq.s32.totalorder %s19, 1
      %p100 = por %p98, %p99
      %p101 = scmp.ne.s32.totalorder %s92, %s93
      %p102 = scmp.eq.s32.totalorder %s19, 0
      %p103 = por %p101, %p102
      %p104 = scmp.ne.s32.totalorder %s92, %s93
      %p105 = scmp.eq.s32.totalorder %s20, 1
      %p106 = por %p104, %p105
      %p108 = scmp.ne.s32.totalorder %s93, %s107
      %p109 = scmp.eq.s32.totalorder %s20, 0
      %p110 = por %p108, %p109
      %s112 = sadd.s32 %s111, 1
      %p115 = scmp.eq.s32.totalorder %s14, 1
      %p116 = scmp.ne.s32.totalorder %s111, %s113
      %p117 = scmp.eq.s32.totalorder %s14, 0
      %p118 = por %p116, %p117
      %p119 = scmp.ne.s32.totalorder %s111, %s113
      %p120 = scmp.eq.s32.totalorder %s19, 1
      %p121 = por %p119, %p120
      %p122 = scmp.ne.s32.totalorder %s113, %s114
      %p123 = scmp.eq.s32.totalorder %s19, 0
      %p124 = por %p122, %p123
      %p125 = scmp.ne.s32.totalorder %s113, %s114
      %p126 = scmp.eq.s32.totalorder %s20, 1
      %p127 = por %p125, %p126
      %p129 = scmp.ne.s32.totalorder %s114, %s128
      %p130 = scmp.eq.s32.totalorder %s20, 0
      %p131 = por %p129, %p130
      %s132 = ssub.s32 %s14, %s21
      %p133 = scmp.eq.s32.totalorder %s132, 0
      %s135 = sadd.s32 %s134, 1
      %s136 = scalar_select %p133, %s134, %s135
      %p139 = pneg %p133
      %p140 = scmp.eq.s32.totalorder %s14, 1
      %p141 = por %p139, %p140
      %p142 = scmp.ne.s32.totalorder %s134, %s137
      %p143 = scmp.eq.s32.totalorder %s14, 0
      %p144 = por %p142, %p143
      %p145 = scmp.ne.s32.totalorder %s134, %s137
      %p146 = scmp.eq.s32.totalorder %s19, 1
      %p147 = por %p145, %p146
      %p148 = scmp.ne.s32.totalorder %s137, %s138
      %p149 = scmp.eq.s32.totalorder %s19, 0
      %p150 = por %p148, %p149
      %p151 = scmp.ne.s32.totalorder %s137, %s138
      %p152 = scmp.eq.s32.totalorder %s20, 1
      %p153 = por %p151, %p152
      %p155 = scmp.ne.s32.totalorder %s138, %s154
      %p156 = scmp.eq.s32.totalorder %s20, 0
      %p157 = por %p155, %p156
      %p158 = scmp.le.s32.totalorder 1, %s14
      %p159 = scmp.lt.s32.totalorder %s14, 3
      %p160 = pnand %p158, %p159
      %p161 = pneg %p160
      // Predicated region
      $region9: #{tpu_custom_call.1} parent=5 // pred_check
        _
      $region10: #{tpu_custom_call.1} parent=5 // pred_check_branch
        %163 = sbr.rel (%p160) target = $region12
      $region11: #{tpu_custom_call.1} parent=5 // pred_region
        %s164 = ssub.s32 %s14, 1
        // Predicated region
        $region13: #{tpu_custom_call.1} parent=11 // pred_check
          %p165 = pneg %p61
        $region14: #{tpu_custom_call.1} parent=11 // pred_check_branch
          %167 = sbr.rel (%p165) target = $region16
        $region15: #{tpu_custom_call.1} parent=11 // pred_region
          _
        $region16: #{tpu_custom_call.1} parent=11 // pred_fallthru
          _
        // Predicated region
        $region17: #{tpu_custom_call.1} parent=11 // pred_check
          %p168 = pneg %p82
        $region18: #{tpu_custom_call.1} parent=11 // pred_check_branch
          %170 = sbr.rel (%p168) target = $region20
        $region19: #{tpu_custom_call.1} parent=11 // pred_region
          _
        $region20: #{tpu_custom_call.1} parent=11 // pred_fallthru
          _
        // Predicated region
        $region21: #{tpu_custom_call.1} parent=11 // pred_check
          %p171 = pneg %p103
        $region22: #{tpu_custom_call.1} parent=11 // pred_check_branch
          %173 = sbr.rel (%p171) target = $region24
        $region23: #{tpu_custom_call.1} parent=11 // pred_region
          _
        $region24: #{tpu_custom_call.1} parent=11 // pred_fallthru
          _
        // Predicated region
        $region25: #{tpu_custom_call.1} parent=11 // pred_check
          %p174 = pneg %p124
        $region26: #{tpu_custom_call.1} parent=11 // pred_check_branch
          %176 = sbr.rel (%p174) target = $region28
        $region27: #{tpu_custom_call.1} parent=11 // pred_region
          _
        $region28: #{tpu_custom_call.1} parent=11 // pred_fallthru
          _
      $region12: #{tpu_custom_call.1} parent=5 // pred_fallthru
        _
      %p177 = scmp.lt.s32.totalorder %s14, 2
      // Predicated region
      $region29: #{tpu_custom_call.1} parent=5 // pred_check
        %p178 = pneg %p177
      $region30: #{tpu_custom_call.1} parent=5 // pred_check_branch
        %180 = sbr.rel (%p178) target = $region32
      $region31: #{tpu_custom_call.1} parent=5 // pred_region
        // Predicated region
        $region33: #{tpu_custom_call.1} parent=31 // pred_check
          %p181 = pneg %p34
        $region34: #{tpu_custom_call.1} parent=31 // pred_check_branch
          %183 = sbr.rel (%p181) target = $region36
        $region35: #{tpu_custom_call.1} parent=31 // pred_region
          %p184 = scmp.lt.s32.totalorder %s14, 1
          %s185 = scalar_select %p184, %s14, 1
          %s186 = smul.addr %s185, 8
          %s187 = scalar_lea.vmem %s0, %s186
        $region36: #{tpu_custom_call.1} parent=31 // pred_fallthru
          _
      $region32: #{tpu_custom_call.1} parent=5 // pred_fallthru
        _
      %p188 = scmp.le.s32.totalorder 1, %s14
      %p189 = scmp.lt.s32.totalorder %s14, 3
      %p190 = pnand %p188, %p189
      %p191 = pneg %p190
      // Predicated region
      $region37: #{tpu_custom_call.1} parent=5 // pred_check
        _
      $region38: #{tpu_custom_call.1} parent=5 // pred_check_branch
        %193 = sbr.rel (%p190) target = $region40
      $region39: #{tpu_custom_call.1} parent=5 // pred_region
        %s194 = ssub.s32 %s14, 1
        %p195 = scmp.lt.s32.totalorder %s19, 1
        %s196 = scalar_select %p195, %s19, 1
        %s197 = smul.addr %s196, 8
        %s198 = scalar_lea.vmem %s0, %s197
        %p199 = pneg %p40
        %p200 = pneg %p37
        %p201 = pneg %p61
        %p202 = pneg %p58
        %p203 = pneg %p82
        %p204 = pneg %p79
        %p205 = pneg %p103
        %p206 = pneg %p100
        %p207 = pneg %p124
        %p208 = pneg %p121
        %p209 = pneg %p150
        %p210 = pneg %p147
        %s211 = sand.u32 %s137, 1
        %s212 = scalar_lea.sflag [#allocation3], %s211
        %s213 = sand.u32 %s137, 1
        %s214 = smul.addr %s213, 8
        %s215 = scalar_lea.vmem [#allocation2], %s214
        %p216 = scmp.lt.s32.totalorder %s19, 1
        %s217 = scalar_select %p216, %s19, 1
        %s218 = smul.addr %s217, 8
        %s219 = scalar_lea.vmem %s0, %s218
        %v220 = vld [vmem:[%s219] sm:$0xff]
        %vm221 = vcmask 523264
        %v222 = vsel %vm221, %v220, 0.0
        %223 = vadd.xlane.f32.xlu0 %v222
        %v224 = vpop.xlane.xlu0 %223
        %v225 = vmul.f32 %v224, 0.015625
        %v226 = vld [vmem:[%s1] sm:$0xff]
        %v227 = vmul.f32 %v226, %v225
        %vm228 = vcmask 15360
        %v229 = vsel %vm228, %v227, 0.0
        %v230 = vrot.slane %v229, 4
        %v231 = vadd.f32 %v229, %v230
        %v232 = vrot.slane %v231, 2
        %v233 = vadd.f32 %v231, %v232
        %v234 = vrot.slane %v233, 1
        %v235 = vadd.f32 %v233, %v234
        %v236 = vld [vmem:[%s2] sm:$0x1]
        %v237 = vadd.f32 %v235, %v236
        %v238 = vmax.f32 %v237, 0.0
        %v239 = vld [vmem:[%s3] sm:$0xff]
        %v240 = vlaneseq
        %v241 = vshrl.u32 %v240, 7
        %v242 = vsub.s32 0, %v241
        %v243 = vrot.slane %v238, %v242
        %v244 = vmul.f32 %v239, %v243
        %v245 = vsel %vm228, %v244, 0.0
        %246 = vadd.xlane.f32.xlu0 %v245
        %v247 = vpop.xlane.xlu0 %246
        %v248 = vld [vmem:[%s4] sm:$0xff]
        %v249 = vadd.f32 %v247, %v248
        %v250 = vxor.u32 %v249, 2147483648
        %v251 = vmul.f32 %v250, 1.442695
        %v252 = vpow.pop %v251
        %v253 = vadd.f32 %v252, 1.0
        %v254 = vrcp.pop %v253
        %v255 = vmul.f32 1.0, %v254
        %257 = vset.pattern.permute.xlu0 0
        %258 = vperm.xlu0 %257, %v255
        %v259 = vpop.permute.xlu0 %258
        %v261 = vmul.f32 %v220, %v259
        %262 = vst.msk [vmem:[%s215] sm:$0xff] %vm221, %v261
        %s263 = sand.u32 %s137, 1
        %s264 = scalar_lea.sflag [#allocation3], %s263
        %s265 = sand.u32 %s137, 1
        %s266 = smul.addr %s265, 8
        %s267 = scalar_lea.vmem [#allocation2], %s266
        // Predicated region
        $region41: #{tpu_custom_call.1} parent=39 // pred_check
          %p268 = pneg %p147
        $region42: #{tpu_custom_call.1} parent=39 // pred_check_branch
          %270 = sbr.rel (%p268) target = $region44
        $region43: #{tpu_custom_call.1} parent=39 // pred_region
          %s272 = ssub.s32 128, 128
          %273 = vsyncadd %s264, %s272
          %s274 = smul.addr %s19, 128
          %s275 = scalar_lea.hbm %s5, %s274
          %s277 = sshll.u32 %s267, 4
          %s278 = int_to_ptr.vmem [resolvable:$true] %s277
          %280 = dma.vmem_to_hbm [thread:$0]  %s278, 128, %s275, %s264
        $region44: #{tpu_custom_call.1} parent=39 // pred_fallthru
          _
      $region40: #{tpu_custom_call.1} parent=5 // pred_fallthru
        _
      %p281 = scmp.le.s32.totalorder 2, %s14
      // Predicated region
      $region45: #{tpu_custom_call.1} parent=5 // pred_check
        %p282 = pneg %p281
      $region46: #{tpu_custom_call.1} parent=5 // pred_check_branch
        %284 = sbr.rel (%p282) target = $region48
      $region47: #{tpu_custom_call.1} parent=5 // pred_region
        %s285 = ssub.s32 %s14, 2
        // Predicated region
        $region49: #{tpu_custom_call.1} parent=47 // pred_check
          %p286 = pneg %p153
        $region50: #{tpu_custom_call.1} parent=47 // pred_check_branch
          %288 = sbr.rel (%p286) target = $region52
        $region51: #{tpu_custom_call.1} parent=47 // pred_region
          %s289 = sand.u32 %s138, 1
          %s290 = scalar_lea.sflag [#allocation3], %s289
          %s291 = sand.u32 %s138, 1
          %s292 = smul.addr %s291, 8
          %s293 = scalar_lea.vmem [#allocation2], %s292
          %294 = dma.done %s290, 128
        $region52: #{tpu_custom_call.1} parent=47 // pred_fallthru
          _
      $region48: #{tpu_custom_call.1} parent=5 // pred_fallthru
        _
    $region6: #{tpu_custom_call.1} parent=1 // loop_footer
      %s18 = sadd.s32 1, %s14
    $region7: #{tpu_custom_call.1} parent=1 // loop_footer_branch
      %13 = sbr.rel target = $region3
    $region8: #{tpu_custom_call.1} parent=1 // loop_exit
      _
    %295 = vsyncpa [#allocation3], 1
    %s296 = scalar_lea.sflag [#allocation3], 1
    %297 = vsyncpa %s296, 1

</llo_original>
